<compile_context>
chip_gen: v7x
topology: tpu7x:2x2x1
jax: 0.10.0
libtpu: 0.0.40
codegen_flags: <defaults>
</compile_context>

<pallas_src>
import numpy as np
import jax
import jax.numpy as jnp
from jax.experimental import pallas as pl
from jax.experimental.pallas import tpu as pltpu

IN_DIM = 512
HIDDEN = 64
HIDDEN_PAD = 128   # pad the 64-wide contraction to a full 128-lane MXU tile


def _round_up(n, m):
    return (n + m - 1) // m * m


def classifier_kernel(x_ref, w1_ref, b1_ref, w2_ref, b2_ref, o_ref):
    # x_ref:(tm,512) f32   w1_ref:(512,128) bf16   b1_ref:(1,128) f32
    # w2_ref:(128,C) bf16  b2_ref:(1,C) f32        o_ref:(tm,C) f32/bf16
    # Cast x to bf16 in-kernel: VPU cast is free filler under the HBM bound and
    # avoids a separate wrapper-side cast pass over x in HBM.
    x_bf = x_ref[...].astype(jnp.bfloat16)
    h = jnp.dot(x_bf, w1_ref[...], preferred_element_type=jnp.float32)     # MXU, f32 acc
    h = jnp.maximum(h + b1_ref[...], 0.0)                                  # bias + ReLU (f32)
    out = jnp.dot(h.astype(jnp.bfloat16), w2_ref[...],
                  preferred_element_type=jnp.float32)                      # MXU, f32 acc
    o_ref[...] = (out + b2_ref[...]).astype(o_ref.dtype)


def prepare_params(w1, b1, w2, b2):
    """One-time parameter prep. Call once, reuse the result across forward calls.

    Pads the hidden dim 64 -> 128 with zeros (numerically a no-op, lane-dense
    MXU tiles) and casts matmul weights to bf16. Biases stay f32.
    """
    class_num = w2.shape[1]
    w1 = jnp.asarray(w1, jnp.float32)
    w2 = jnp.asarray(w2, jnp.float32)
    w1p = (jnp.zeros((IN_DIM, HIDDEN_PAD), jnp.float32)
           .at[:, :HIDDEN].set(w1)).astype(jnp.bfloat16)
    b1p = (jnp.zeros((1, HIDDEN_PAD), jnp.float32)
           .at[:, :HIDDEN].set(jnp.reshape(jnp.asarray(b1, jnp.float32), (1, HIDDEN))))
    w2p = (jnp.zeros((HIDDEN_PAD, class_num), jnp.float32)
           .at[:HIDDEN, :].set(w2)).astype(jnp.bfloat16)
    b2p = jnp.reshape(jnp.asarray(b2, jnp.float32), (1, class_num))
    return w1p, b1p, w2p, b2p


def classifier_forward(x, params, *, tm_max=1024, out_dtype=jnp.float32):
    """x: (B, 512) f32; params = prepare_params(w1, b1, w2, b2).

    Returns (B, class_num) == ReLU(x @ w1 + b1) @ w2 + b2 (bf16 MXU path, f32 accum).
    """
    w1p, b1p, w2p, b2p = params
    B = x.shape[0]
    class_num = w2p.shape[1]

    # ---- batch tile selection ------------------------------------------------
    # Big tiles amortize the ~0.35 us per-grid-step overhead (op is HBM-bound);
    # cap so the grid has >= 2 steps when the batch allows it, so the "parallel"
    # axis can be sharded across v7x's two TensorCores.
    if B <= 8:
        tm = B                                        # single tile == full batch dim
    else:
        tm = min(tm_max, _round_up(pl.cdiv(B, 2), 8))
    grid = (pl.cdiv(B, tm),)
    # No batch padding and no post-kernel slicing: Pallas masks out-of-bounds rows
    # of the ragged last block on store, and the output last dim is the true
    # class_num (full-dim block), so there is no padded-column copy either.

    flops = 2 * B * (IN_DIM * HIDDEN_PAD + HIDDEN_PAD * class_num)
    bytes_accessed = (x.size * x.dtype.itemsize
                      + w1p.size * 2 + w2p.size * 2
                      + b1p.size * 4 + b2p.size * 4
                      + B * class_num * np.dtype(out_dtype).itemsize)

    return pl.pallas_call(
        classifier_kernel,
        out_shape=jax.ShapeDtypeStruct((B, class_num), out_dtype),
        grid=grid,
        in_specs=[
            pl.BlockSpec((tm, IN_DIM), lambda i: (i, 0)),              # x: batch-tiled
            pl.BlockSpec((IN_DIM, HIDDEN_PAD), lambda i: (0, 0)),      # w1: VMEM-resident
            pl.BlockSpec((1, HIDDEN_PAD), lambda i: (0, 0)),           # b1
            pl.BlockSpec((HIDDEN_PAD, class_num), lambda i: (0, 0)),   # w2: VMEM-resident
            pl.BlockSpec((1, class_num), lambda i: (0, 0)),            # b2
        ],
        out_specs=pl.BlockSpec((tm, class_num), lambda i: (i, 0)),
        compiler_params=pltpu.CompilerParams(
            dimension_semantics=("parallel",),         # megacore sharding on v7x
            # tm=1024, C=1000: 2*(2 MiB x + ~4 MiB out) double-buffered + ~0.8 MiB
            # weights ~= 13 MiB peak -> needs the override on v5e (16 MiB default
            # scoped VMEM), comfortably under v7x's 64 MiB physical VMEM.
            vmem_limit_bytes=32 * 1024 * 1024,
        ),
        cost_estimate=pl.CostEstimate(
            flops=flops, transcendentals=0, bytes_accessed=bytes_accessed),
    )(x, w1p, b1p, w2p, b2p)


def init_params(key, in_dim=IN_DIM, hidden=HIDDEN, class_num=1000):
    """PyTorch nn.Linear-style init, weights stored [in, out] (== x @ W.T in torch)."""
    k1, k2, k3, k4 = jax.random.split(key, 4)
    bound1 = 1.0 / jnp.sqrt(in_dim)
    bound2 = 1.0 / jnp.sqrt(hidden)
    w1 = jax.random.uniform(k1, (in_dim, hidden), jnp.float32, -bound1, bound1)
    b1 = jax.random.uniform(k2, (1, hidden), jnp.float32, -bound1, bound1)
    w2 = jax.random.uniform(k3, (hidden, class_num), jnp.float32, -bound2, bound2)
    b2 = jax.random.uniform(k4, (1, class_num), jnp.float32, -bound2, bound2)
    return w1, b1, w2, b2


if __name__ == "__main__":
    key = jax.random.PRNGKey(0)
    kx, kx2, kp = jax.random.split(key, 3)

    CLASS_NUM = 1000  # module default

    w1, b1, w2, b2 = init_params(kp, IN_DIM, HIDDEN, CLASS_NUM)
    # One-time weight prep (cached on the params, off the per-call critical path).
    params = jax.block_until_ready(prepare_params(w1, b1, w2, b2))

    # Case 1: tiny batch, single tile.
    B = 8
    x = jax.random.normal(kx, (B, IN_DIM), jnp.float32)
    out = jax.block_until_ready(classifier_forward(x, params))
    ref = jnp.maximum(x @ w1 + b1, 0.0) @ w2 + b2
    assert out.shape == (B, CLASS_NUM)
    # bf16 MXU path -> looser tolerance than pure-f32.
    assert jnp.allclose(out, ref, atol=2.5e-2, rtol=2.5e-2), \
        float(jnp.max(jnp.abs(out - ref)))

    # Case 2: exercises the 2-step batch grid and the ragged (masked-store) last block.
    B2 = 300
    x2 = jax.random.normal(kx2, (B2, IN_DIM), jnp.float32)
    out2 = jax.block_until_ready(classifier_forward(x2, params))
    ref2 = jnp.maximum(x2 @ w1 + b1, 0.0) @ w2 + b2
    assert out2.shape == (B2, CLASS_NUM)
    assert jnp.allclose(out2, ref2, atol=2.5e-2, rtol=2.5e-2), \
        float(jnp.max(jnp.abs(out2 - ref2)))

    print("KERNEL_OK")
</pallas_src>

<mosaic_0001>
module attributes {stable_mosaic.version = 11 : i64} {
  func.func @classifier_kernel(%arg0: i32, %arg1: memref<8x512xf32, #tpu.memory_space<vmem>>, %arg2: memref<512x128xbf16, #tpu.memory_space<vmem>>, %arg3: memref<1x128xf32, #tpu.memory_space<vmem>>, %arg4: memref<128x1000xbf16, #tpu.memory_space<vmem>>, %arg5: memref<1x1000xf32, #tpu.memory_space<vmem>>, %arg6: memref<8x1000xf32, #tpu.memory_space<vmem>>) attributes {dimension_semantics = [#tpu.dimension_semantics<parallel>], iteration_bounds = array<i64: 1>, scalar_prefetch = 0 : i64, scratch_operands = 0 : i64, tpu.core_type = #tpu.core_type<tc>, window_params = [{transform_indices = @transform_0, window_bounds = array<i64: 8, 512>}, {pipeline_mode = #tpu.pipeline_mode<synchronous>, transform_indices = @transform_1, window_bounds = array<i64: 512, 128>}, {pipeline_mode = #tpu.pipeline_mode<synchronous>, transform_indices = @transform_2, window_bounds = array<i64: 1, 128>}, {pipeline_mode = #tpu.pipeline_mode<synchronous>, transform_indices = @transform_3, window_bounds = array<i64: 128, 1000>}, {pipeline_mode = #tpu.pipeline_mode<synchronous>, transform_indices = @transform_4, window_bounds = array<i64: 1, 1000>}, {transform_indices = @transform_5, window_bounds = array<i64: 8, 1000>}]} {
    %c0 = arith.constant 0 : index
    %c0_0 = arith.constant 0 : index
    %0 = vector.load %arg1[%c0, %c0_0] : memref<8x512xf32, #tpu.memory_space<vmem>>, vector<8x512xf32>
    %1 = arith.truncf %0 : vector<8x512xf32> to vector<8x512xbf16>
    %c0_1 = arith.constant 0 : index
    %c0_2 = arith.constant 0 : index
    %2 = vector.load %arg2[%c0_1, %c0_2] : memref<512x128xbf16, #tpu.memory_space<vmem>>, vector<512x128xbf16>
    %cst = arith.constant dense<0.000000e+00> : vector<8x128xf32>
    %3 = tpu.matmul %1, %2, %cst {dimension_numbers = #tpu.dot_dimension_numbers<[1], [0], [0], [1], [0, 0, 1, 1], [], []>} : vector<8x512xbf16>, vector<512x128xbf16>, vector<8x128xf32> -> vector<8x128xf32>
    %c0_3 = arith.constant 0 : index
    %c0_4 = arith.constant 0 : index
    %4 = vector.load %arg3[%c0_3, %c0_4] : memref<1x128xf32, #tpu.memory_space<vmem>>, vector<1x128xf32>
    %5 = vector.broadcast %4 : vector<1x128xf32> to vector<8x128xf32>
    %6 = arith.addf %3, %5 : vector<8x128xf32>
    %cst_5 = arith.constant 0.000000e+00 : f32
    %7 = vector.broadcast %cst_5 : f32 to vector<8x128xf32>
    %8 = arith.maximumf %6, %7 : vector<8x128xf32>
    %9 = arith.truncf %8 : vector<8x128xf32> to vector<8x128xbf16>
    %c0_6 = arith.constant 0 : index
    %c0_7 = arith.constant 0 : index
    %10 = vector.load %arg4[%c0_6, %c0_7] : memref<128x1000xbf16, #tpu.memory_space<vmem>>, vector<128x1000xbf16>
    %cst_8 = arith.constant dense<0.000000e+00> : vector<8x1000xf32>
    %11 = tpu.matmul %9, %10, %cst_8 {dimension_numbers = #tpu.dot_dimension_numbers<[1], [0], [0], [1], [0, 0, 1, 1], [], []>} : vector<8x128xbf16>, vector<128x1000xbf16>, vector<8x1000xf32> -> vector<8x1000xf32>
    %c0_9 = arith.constant 0 : index
    %c0_10 = arith.constant 0 : index
    %12 = vector.load %arg5[%c0_9, %c0_10] : memref<1x1000xf32, #tpu.memory_space<vmem>>, vector<1x1000xf32>
    %13 = vector.broadcast %12 : vector<1x1000xf32> to vector<8x1000xf32>
    %14 = arith.addf %11, %13 : vector<8x1000xf32>
    %c0_11 = arith.constant 0 : index
    %c0_12 = arith.constant 0 : index
    %15 = vector.load %arg6[%c0_11, %c0_12] : memref<8x1000xf32, #tpu.memory_space<vmem>>, vector<8x1000xf32>
    tpu.vector_store %arg6[%c0_11, %c0_12], %14 {strides = array<i32>} : memref<8x1000xf32, #tpu.memory_space<vmem>>, vector<8x1000xf32>,
    return
  }
  func.func @transform_0(%arg0: i32) -> (i32, i32) {
    %c0_i32 = arith.constant 0 : i32
    %c0_i32_0 = arith.constant 0 : i32
    return %arg0, %c0_i32 : i32, i32
  }
  func.func @transform_1(%arg0: i32) -> (i32, i32) {
    %c0_i32 = arith.constant 0 : i32
    %c0_i32_0 = arith.constant 0 : i32
    %c0_i32_1 = arith.constant 0 : i32
    return %c0_i32, %c0_i32_0 : i32, i32
  }
  func.func @transform_2(%arg0: i32) -> (i32, i32) {
    %c0_i32 = arith.constant 0 : i32
    %c0_i32_0 = arith.constant 0 : i32
    %c0_i32_1 = arith.constant 0 : i32
    return %c0_i32, %c0_i32_0 : i32, i32
  }
  func.func @transform_3(%arg0: i32) -> (i32, i32) {
    %c0_i32 = arith.constant 0 : i32
    %c0_i32_0 = arith.constant 0 : i32
    %c0_i32_1 = arith.constant 0 : i32
    return %c0_i32, %c0_i32_0 : i32, i32
  }
  func.func @transform_4(%arg0: i32) -> (i32, i32) {
    %c0_i32 = arith.constant 0 : i32
    %c0_i32_0 = arith.constant 0 : i32
    %c0_i32_1 = arith.constant 0 : i32
    return %c0_i32, %c0_i32_0 : i32, i32
  }
  func.func @transform_5(%arg0: i32) -> (i32, i32) {
    %c0_i32 = arith.constant 0 : i32
    %c0_i32_0 = arith.constant 0 : i32
    return %arg0, %c0_i32 : i32, i32
  }
}

</mosaic_0001>

<llo_original>
// kernel: tpu_custom_call.1
$region0: #{tpu_custom_call.1}
  #allocation0 [shape = 'u32[]', space=smem, size = 0x4, offset = 0x4, fixed_abs, tag = 'smem constant byte address 0x4 - core index']
  #allocation1 [shape = 'u32[144,128]{1,0:T(1,128)}', space=vmem, size = 0x12000, scoped, tag = 'internal scratch']
  %s0 = inlined_call_operand.vmem [shape: f32[8,512], index: 0, kind: input, shape index: {}]
  %s1 = inlined_call_operand.vmem [shape: bf16[512,128], index: 1, kind: input, shape index: {}]
  %s2 = inlined_call_operand.vmem [shape: f32[1,128], index: 2, kind: input, shape index: {}]
  %s3 = inlined_call_operand.vmem [shape: bf16[128,1000], index: 3, kind: input, shape index: {}]
  %s4 = inlined_call_operand.vmem [shape: f32[1,1000], index: 4, kind: input, shape index: {}]
  %s5 = inlined_call_operand.hbm [shape: f32[8,1000], index: 5, kind: output, shape index: {}]
  %s6 = sld [smem:[#allocation0]]
  $region30: #{tpu_custom_call.1} parent=0
    _
  %s8 = ssub.s32 1, %s6
  %s9 = scalar_select 0, %s8, %s6
  $region1: #{tpu_custom_call.1} parent=0
    #allocation2 [shape = 'u8[32768]{0}', space=vmem, size = 0x8000, scoped, tag = 'output window, operand 0, single buffered']
    #allocation3 [shape = 's32[1]{0}', space=sflag, size = 0x4, scoped, tag = 'scoped memory for tpu_custom_call.1']
    %10 = vsyncpa [#allocation3], 0
    // Predicated region
    $region2: #{tpu_custom_call.1} parent=1 // pred_check
      _
    $region3: #{tpu_custom_call.1} parent=1 // pred_check_branch
      %12 = sbr.rel (0) target = $region5
    $region4: #{tpu_custom_call.1} parent=1 // pred_region
      _
    $region5: #{tpu_custom_call.1} parent=1 // pred_fallthru
      _
    // Predicated region
    $region6: #{tpu_custom_call.1} parent=1 // pred_check
      _
    $region7: #{tpu_custom_call.1} parent=1 // pred_check_branch
      %14 = sbr.rel (0) target = $region9
    $region8: #{tpu_custom_call.1} parent=1 // pred_region
      _
    $region9: #{tpu_custom_call.1} parent=1 // pred_fallthru
      _
    // Predicated region
    $region10: #{tpu_custom_call.1} parent=1 // pred_check
      _
    $region11: #{tpu_custom_call.1} parent=1 // pred_check_branch
      %16 = sbr.rel (0) target = $region13
    $region12: #{tpu_custom_call.1} parent=1 // pred_region
      _
    $region13: #{tpu_custom_call.1} parent=1 // pred_fallthru
      _
    // Predicated region
    $region14: #{tpu_custom_call.1} parent=1 // pred_check
      _
    $region15: #{tpu_custom_call.1} parent=1 // pred_check_branch
      %18 = sbr.rel (0) target = $region17
    $region16: #{tpu_custom_call.1} parent=1 // pred_region
      _
    $region17: #{tpu_custom_call.1} parent=1 // pred_fallthru
      _
    // Predicated region
    $region18: #{tpu_custom_call.1} parent=1 // pred_check
      _
    $region19: #{tpu_custom_call.1} parent=1 // pred_check_branch
      %20 = sbr.rel (0) target = $region21
    $region20: #{tpu_custom_call.1} parent=1 // pred_region
      _
    $region21: #{tpu_custom_call.1} parent=1 // pred_fallthru
      _
    %v22 = vld [vmem:[%s0] sm:$0xff]
    %v23 = vld [vmem:[%s0 + $0x8] sm:$0xff]
    %v24 = vld [vmem:[%s0 + $0x10] sm:$0xff]
    %v25 = vld [vmem:[%s0 + $0x18] sm:$0xff]
    %v26 = vpack.c.bf16 %v22, %v22
    %v27 = vpack.c.bf16 %v23, %v23
    %v28 = vpack.c.bf16 %v24, %v24
    %v29 = vpack.c.bf16 %v25, %v25
    %v30 = vld [vmem:[%s1] sm:$0xf]
    %v31 = vld [vmem:[%s1 + $0x4] sm:$0xf]
    %v32 = vld [vmem:[%s1 + $0x8] sm:$0xf]
    %v33 = vld [vmem:[%s1 + $0xc] sm:$0xf]
    %v34 = vld [vmem:[%s1 + $0x10] sm:$0xf]
    %v35 = vld [vmem:[%s1 + $0x14] sm:$0xf]
    %v36 = vld [vmem:[%s1 + $0x18] sm:$0xf]
    %v37 = vld [vmem:[%s1 + $0x1c] sm:$0xf]
    %v38 = vld [vmem:[%s1 + $0x20] sm:$0xf]
    %v39 = vld [vmem:[%s1 + $0x24] sm:$0xf]
    %v40 = vld [vmem:[%s1 + $0x28] sm:$0xf]
    %v41 = vld [vmem:[%s1 + $0x2c] sm:$0xf]
    %v42 = vld [vmem:[%s1 + $0x30] sm:$0xf]
    %v43 = vld [vmem:[%s1 + $0x34] sm:$0xf]
    %v44 = vld [vmem:[%s1 + $0x38] sm:$0xf]
    %v45 = vld [vmem:[%s1 + $0x3c] sm:$0xf]
    %v46 = vld [vmem:[%s1 + $0x40] sm:$0xf]
    %v47 = vld [vmem:[%s1 + $0x44] sm:$0xf]
    %v48 = vld [vmem:[%s1 + $0x48] sm:$0xf]
    %v49 = vld [vmem:[%s1 + $0x4c] sm:$0xf]
    %v50 = vld [vmem:[%s1 + $0x50] sm:$0xf]
    %v51 = vld [vmem:[%s1 + $0x54] sm:$0xf]
    %v52 = vld [vmem:[%s1 + $0x58] sm:$0xf]
    %v53 = vld [vmem:[%s1 + $0x5c] sm:$0xf]
    %v54 = vld [vmem:[%s1 + $0x60] sm:$0xf]
    %v55 = vld [vmem:[%s1 + $0x64] sm:$0xf]
    %v56 = vld [vmem:[%s1 + $0x68] sm:$0xf]
    %v57 = vld [vmem:[%s1 + $0x6c] sm:$0xf]
    %v58 = vld [vmem:[%s1 + $0x70] sm:$0xf]
    %v59 = vld [vmem:[%s1 + $0x74] sm:$0xf]
    %v60 = vld [vmem:[%s1 + $0x78] sm:$0xf]
    %v61 = vld [vmem:[%s1 + $0x7c] sm:$0xf]
    %v62 = vld [vmem:[%s1 + $0x80] sm:$0xf]
    %v63 = vld [vmem:[%s1 + $0x84] sm:$0xf]
    %v64 = vld [vmem:[%s1 + $0x88] sm:$0xf]
    %v65 = vld [vmem:[%s1 + $0x8c] sm:$0xf]
    %v66 = vld [vmem:[%s1 + $0x90] sm:$0xf]
    %v67 = vld [vmem:[%s1 + $0x94] sm:$0xf]
    %v68 = vld [vmem:[%s1 + $0x98] sm:$0xf]
    %v69 = vld [vmem:[%s1 + $0x9c] sm:$0xf]
    %v70 = vld [vmem:[%s1 + $0xa0] sm:$0xf]
    %v71 = vld [vmem:[%s1 + $0xa4] sm:$0xf]
    %v72 = vld [vmem:[%s1 + $0xa8] sm:$0xf]
    %v73 = vld [vmem:[%s1 + $0xac] sm:$0xf]
    %v74 = vld [vmem:[%s1 + $0xb0] sm:$0xf]
    %v75 = vld [vmem:[%s1 + $0xb4] sm:$0xf]
    %v76 = vld [vmem:[%s1 + $0xb8] sm:$0xf]
    %v77 = vld [vmem:[%s1 + $0xbc] sm:$0xf]
    %v78 = vld [vmem:[%s1 + $0xc0] sm:$0xf]
    %v79 = vld [vmem:[%s1 + $0xc4] sm:$0xf]
    %v80 = vld [vmem:[%s1 + $0xc8] sm:$0xf]
    %v81 = vld [vmem:[%s1 + $0xcc] sm:$0xf]
    %v82 = vld [vmem:[%s1 + $0xd0] sm:$0xf]
    %v83 = vld [vmem:[%s1 + $0xd4] sm:$0xf]
    %v84 = vld [vmem:[%s1 + $0xd8] sm:$0xf]
    %v85 = vld [vmem:[%s1 + $0xdc] sm:$0xf]
    %v86 = vld [vmem:[%s1 + $0xe0] sm:$0xf]
    %v87 = vld [vmem:[%s1 + $0xe4] sm:$0xf]
    %v88 = vld [vmem:[%s1 + $0xe8] sm:$0xf]
    %v89 = vld [vmem:[%s1 + $0xec] sm:$0xf]
    %v90 = vld [vmem:[%s1 + $0xf0] sm:$0xf]
    %v91 = vld [vmem:[%s1 + $0xf4] sm:$0xf]
    %v92 = vld [vmem:[%s1 + $0xf8] sm:$0xf]
    %v93 = vld [vmem:[%s1 + $0xfc] sm:$0xf]
    %v94 = vld [vmem:[%s2] sm:$0x1]
    %v96 = vlaneseq
    %v97 = vshrl.u32 %v96, 7
    %v98 = vsub.s32 0, %v97
    %v99 = vrot.slane %v94, %v98
    %v165 = vunpack.c.l.b16 %v30
    %v166 = vunpack.c.l.b16 %v31
    %v167 = vunpack.c.l.b16 %v32
    %v168 = vunpack.c.l.b16 %v33
    %v169 = vunpack.c.l.b16 %v34
    %v170 = vunpack.c.l.b16 %v35
    %v171 = vunpack.c.l.b16 %v36
    %v172 = vunpack.c.l.b16 %v37
    %v173 = vunpack.c.l.b16 %v38
    %v174 = vunpack.c.l.b16 %v39
    %v175 = vunpack.c.l.b16 %v40
    %v176 = vunpack.c.l.b16 %v41
    %v177 = vunpack.c.l.b16 %v42
    %v178 = vunpack.c.l.b16 %v43
    %v179 = vunpack.c.l.b16 %v44
    %v180 = vunpack.c.l.b16 %v45
    %v181 = vunpack.c.l.b16 %v46
    %v182 = vunpack.c.l.b16 %v47
    %v183 = vunpack.c.l.b16 %v48
    %v184 = vunpack.c.l.b16 %v49
    %v185 = vunpack.c.l.b16 %v50
    %v186 = vunpack.c.l.b16 %v51
    %v187 = vunpack.c.l.b16 %v52
    %v188 = vunpack.c.l.b16 %v53
    %v189 = vunpack.c.l.b16 %v54
    %v190 = vunpack.c.l.b16 %v55
    %v191 = vunpack.c.l.b16 %v56
    %v192 = vunpack.c.l.b16 %v57
    %v193 = vunpack.c.l.b16 %v58
    %v194 = vunpack.c.l.b16 %v59
    %v195 = vunpack.c.l.b16 %v60
    %v196 = vunpack.c.l.b16 %v61
    %v197 = vunpack.c.l.b16 %v62
    %v198 = vunpack.c.l.b16 %v63
    %v199 = vunpack.c.l.b16 %v64
    %v200 = vunpack.c.l.b16 %v65
    %v201 = vunpack.c.l.b16 %v66
    %v202 = vunpack.c.l.b16 %v67
    %v203 = vunpack.c.l.b16 %v68
    %v204 = vunpack.c.l.b16 %v69
    %v205 = vunpack.c.l.b16 %v70
    %v206 = vunpack.c.l.b16 %v71
    %v207 = vunpack.c.l.b16 %v72
    %v208 = vunpack.c.l.b16 %v73
    %v209 = vunpack.c.l.b16 %v74
    %v210 = vunpack.c.l.b16 %v75
    %v211 = vunpack.c.l.b16 %v76
    %v212 = vunpack.c.l.b16 %v77
    %v213 = vunpack.c.l.b16 %v78
    %v214 = vunpack.c.l.b16 %v79
    %v215 = vunpack.c.l.b16 %v80
    %v216 = vunpack.c.l.b16 %v81
    %v217 = vunpack.c.l.b16 %v82
    %v218 = vunpack.c.l.b16 %v83
    %v219 = vunpack.c.l.b16 %v84
    %v220 = vunpack.c.l.b16 %v85
    %v221 = vunpack.c.l.b16 %v86
    %v222 = vunpack.c.l.b16 %v87
    %v223 = vunpack.c.l.b16 %v88
    %v224 = vunpack.c.l.b16 %v89
    %v225 = vunpack.c.l.b16 %v90
    %v226 = vunpack.c.l.b16 %v91
    %v227 = vunpack.c.l.b16 %v92
    %v228 = vunpack.c.l.b16 %v93
    %v229 = vpack.c.b16 %v166, %v165
    %v230 = vpack.c.b16 %v168, %v167
    %v231 = vpack.c.b16 %v170, %v169
    %v232 = vpack.c.b16 %v172, %v171
    %v233 = vpack.c.b16 %v174, %v173
    %v234 = vpack.c.b16 %v176, %v175
    %v235 = vpack.c.b16 %v178, %v177
    %v236 = vpack.c.b16 %v180, %v179
    %v237 = vpack.c.b16 %v182, %v181
    %v238 = vpack.c.b16 %v184, %v183
    %v239 = vpack.c.b16 %v186, %v185
    %v240 = vpack.c.b16 %v188, %v187
    %v241 = vpack.c.b16 %v190, %v189
    %v242 = vpack.c.b16 %v192, %v191
    %v243 = vpack.c.b16 %v194, %v193
    %v244 = vpack.c.b16 %v196, %v195
    %v245 = vpack.c.b16 %v198, %v197
    %v246 = vpack.c.b16 %v200, %v199
    %v247 = vpack.c.b16 %v202, %v201
    %v248 = vpack.c.b16 %v204, %v203
    %v249 = vpack.c.b16 %v206, %v205
    %v250 = vpack.c.b16 %v208, %v207
    %v251 = vpack.c.b16 %v210, %v209
    %v252 = vpack.c.b16 %v212, %v211
    %v253 = vpack.c.b16 %v214, %v213
    %v254 = vpack.c.b16 %v216, %v215
    %v255 = vpack.c.b16 %v218, %v217
    %v256 = vpack.c.b16 %v220, %v219
    %v257 = vpack.c.b16 %v222, %v221
    %v258 = vpack.c.b16 %v224, %v223
    %v259 = vpack.c.b16 %v226, %v225
    %v260 = vpack.c.b16 %v228, %v227
    %293 = vmatprep.subr.bf16.mxu0 0
    %294 = vmatpush1.bf16.msra.mxu0 %v229
    %295 = vmatprep.subr.bf16.mxu0 0
    %296 = vmatpush1.bf16.msra.mxu0 %v230
    %297 = vmatprep.subr.bf16.mxu0 0
    %298 = vmatpush1.bf16.msra.mxu0 %v231
    %299 = vmatprep.subr.bf16.mxu0 0
    %300 = vmatpush1.bf16.msra.mxu0 %v232
    %301 = vmatprep.subr.bf16.mxu0 0
    %302 = vmatpush1.bf16.msra.mxu0 %v233
    %303 = vmatprep.subr.bf16.mxu0 0
    %304 = vmatpush1.bf16.msra.mxu0 %v234
    %305 = vmatprep.subr.bf16.mxu0 0
    %306 = vmatpush1.bf16.msra.mxu0 %v235
    %307 = vmatprep.subr.bf16.mxu0 0
    %308 = vmatpush1.bf16.msra.mxu0 %v236
    %309 = vmatprep.subr.bf16.mxu0 0
    %310 = vmatpush1.bf16.msra.mxu0 %v237
    %311 = vmatprep.subr.bf16.mxu0 0
    %312 = vmatpush1.bf16.msra.mxu0 %v238
    %313 = vmatprep.subr.bf16.mxu0 0
    %314 = vmatpush1.bf16.msra.mxu0 %v239
    %315 = vmatprep.subr.bf16.mxu0 0
    %316 = vmatpush1.bf16.msra.mxu0 %v240
    %317 = vmatprep.subr.bf16.mxu0 0
    %318 = vmatpush1.bf16.msra.mxu0 %v241
    %319 = vmatprep.subr.bf16.mxu0 0
    %320 = vmatpush1.bf16.msra.mxu0 %v242
    %321 = vmatprep.subr.bf16.mxu0 0
    %322 = vmatpush1.bf16.msra.mxu0 %v243
    %323 = vmatprep.subr.bf16.mxu0 0
    %324 = vmatpush1.bf16.msra.mxu0 %v244
    %325 = vmatprep.mubr.bf16.mxu0 %v27
    %326 = vmatmul.mubr.bf16.gmra.mrb[0].mxu0 %v26
    %v327 = vpop.f32.mrb[0].mxu0
    %v328 = vadd.f32 %v99, %v327
    %v329 = vpop.f32.mrb[0].mxu0
    %v330 = vpop.f32.mrb[0].mxu0
    %v331 = vpop.f32.mrb[0].mxu0
    %332 = vdwg.mxu0
    %333 = vmatprep.subr.bf16.mxu0 0
    %334 = vmatpush1.bf16.msra.mxu0 %v245
    %335 = vmatprep.subr.bf16.mxu0 0
    %336 = vmatpush1.bf16.msra.mxu0 %v246
    %337 = vmatprep.subr.bf16.mxu0 0
    %338 = vmatpush1.bf16.msra.mxu0 %v247
    %339 = vmatprep.subr.bf16.mxu0 0
    %340 = vmatpush1.bf16.msra.mxu0 %v248
    %341 = vmatprep.subr.bf16.mxu0 0
    %342 = vmatpush1.bf16.msra.mxu0 %v249
    %343 = vmatprep.subr.bf16.mxu0 0
    %344 = vmatpush1.bf16.msra.mxu0 %v250
    %345 = vmatprep.subr.bf16.mxu0 0
    %346 = vmatpush1.bf16.msra.mxu0 %v251
    %347 = vmatprep.subr.bf16.mxu0 0
    %348 = vmatpush1.bf16.msra.mxu0 %v252
    %349 = vmatprep.subr.bf16.mxu0 0
    %350 = vmatpush1.bf16.msra.mxu0 %v253
    %351 = vmatprep.subr.bf16.mxu0 0
    %352 = vmatpush1.bf16.msra.mxu0 %v254
    %353 = vmatprep.subr.bf16.mxu0 0
    %354 = vmatpush1.bf16.msra.mxu0 %v255
    %355 = vmatprep.subr.bf16.mxu0 0
    %356 = vmatpush1.bf16.msra.mxu0 %v256
    %357 = vmatprep.subr.bf16.mxu0 0
    %358 = vmatpush1.bf16.msra.mxu0 %v257
    %359 = vmatprep.subr.bf16.mxu0 0
    %360 = vmatpush1.bf16.msra.mxu0 %v258
    %361 = vmatprep.subr.bf16.mxu0 0
    %362 = vmatpush1.bf16.msra.mxu0 %v259
    %363 = vmatprep.subr.bf16.mxu0 0
    %364 = vmatpush1.bf16.msra.mxu0 %v260
    %365 = vmatprep.mubr.bf16.mxu0 %v29
    %366 = vmatmul.mubr.bf16.gmra.mrb[0].mxu0 %v28
    %v367 = vpop.f32.mrb[0].mxu0
    %v368 = vadd.f32 %v328, %v367
    %v369 = vpop.f32.mrb[0].mxu0
    %v370 = vpop.f32.mrb[0].mxu0
    %v371 = vpop.f32.mrb[0].mxu0
    %372 = vdwg.mxu0
    %v373 = vmax.f32 %v368, 0.0
    %v374 = vpack.c.bf16 %v373, %v373
    %v375 = vld [vmem:[%s3] sm:$0xff]
    %v376 = vld [vmem:[%s3 + $0x8] sm:$0xff]
    %v377 = vld [vmem:[%s3 + $0x10] sm:$0xff]
    %v378 = vld [vmem:[%s3 + $0x18] sm:$0xff]
    %v379 = vld [vmem:[%s3 + $0x20] sm:$0xff]
    %v380 = vld [vmem:[%s3 + $0x28] sm:$0xff]
    %v381 = vld [vmem:[%s3 + $0x30] sm:$0xff]
    %v382 = vld [vmem:[%s3 + $0x38] sm:$0xff]
    %v383 = vld [vmem:[%s3 + $0x40] sm:$0xff]
    %v384 = vld [vmem:[%s3 + $0x48] sm:$0xff]
    %v385 = vld [vmem:[%s3 + $0x50] sm:$0xff]
    %v386 = vld [vmem:[%s3 + $0x58] sm:$0xff]
    %v387 = vld [vmem:[%s3 + $0x60] sm:$0xff]
    %v388 = vld [vmem:[%s3 + $0x68] sm:$0xff]
    %v389 = vld [vmem:[%s3 + $0x70] sm:$0xff]
    %v390 = vld [vmem:[%s3 + $0x78] sm:$0xff]
    %v391 = vld [vmem:[%s3 + $0x80] sm:$0xff]
    %v392 = vld [vmem:[%s3 + $0x88] sm:$0xff]
    %v393 = vld [vmem:[%s3 + $0x90] sm:$0xff]
    %v394 = vld [vmem:[%s3 + $0x98] sm:$0xff]
    %v395 = vld [vmem:[%s3 + $0xa0] sm:$0xff]
    %v396 = vld [vmem:[%s3 + $0xa8] sm:$0xff]
    %v397 = vld [vmem:[%s3 + $0xb0] sm:$0xff]
    %v398 = vld [vmem:[%s3 + $0xb8] sm:$0xff]
    %v399 = vld [vmem:[%s3 + $0xc0] sm:$0xff]
    %v400 = vld [vmem:[%s3 + $0xc8] sm:$0xff]
    %v401 = vld [vmem:[%s3 + $0xd0] sm:$0xff]
    %v402 = vld [vmem:[%s3 + $0xd8] sm:$0xff]
    %v403 = vld [vmem:[%s3 + $0xe0] sm:$0xff]
    %v404 = vld [vmem:[%s3 + $0xe8] sm:$0xff]
    %v405 = vld [vmem:[%s3 + $0xf0] sm:$0xff]
    %v406 = vld [vmem:[%s3 + $0xf8] sm:$0xff]
    %v407 = vld [vmem:[%s3 + $0x100] sm:$0xff]
    %v408 = vld [vmem:[%s3 + $0x108] sm:$0xff]
    %v409 = vld [vmem:[%s3 + $0x110] sm:$0xff]
    %v410 = vld [vmem:[%s3 + $0x118] sm:$0xff]
    %v411 = vld [vmem:[%s3 + $0x120] sm:$0xff]
    %v412 = vld [vmem:[%s3 + $0x128] sm:$0xff]
    %v413 = vld [vmem:[%s3 + $0x130] sm:$0xff]
    %v414 = vld [vmem:[%s3 + $0x138] sm:$0xff]
    %v415 = vld [vmem:[%s3 + $0x140] sm:$0xff]
    %v416 = vld [vmem:[%s3 + $0x148] sm:$0xff]
    %v417 = vld [vmem:[%s3 + $0x150] sm:$0xff]
    %v418 = vld [vmem:[%s3 + $0x158] sm:$0xff]
    %v419 = vld [vmem:[%s3 + $0x160] sm:$0xff]
    %v420 = vld [vmem:[%s3 + $0x168] sm:$0xff]
    %v421 = vld [vmem:[%s3 + $0x170] sm:$0xff]
    %v422 = vld [vmem:[%s3 + $0x178] sm:$0xff]
    %v423 = vld [vmem:[%s3 + $0x180] sm:$0xff]
    %v424 = vld [vmem:[%s3 + $0x188] sm:$0xff]
    %v425 = vld [vmem:[%s3 + $0x190] sm:$0xff]
    %v426 = vld [vmem:[%s3 + $0x198] sm:$0xff]
    %v427 = vld [vmem:[%s3 + $0x1a0] sm:$0xff]
    %v428 = vld [vmem:[%s3 + $0x1a8] sm:$0xff]
    %v429 = vld [vmem:[%s3 + $0x1b0] sm:$0xff]
    %v430 = vld [vmem:[%s3 + $0x1b8] sm:$0xff]
    %v431 = vld [vmem:[%s3 + $0x1c0] sm:$0xff]
    %v432 = vld [vmem:[%s3 + $0x1c8] sm:$0xff]
    %v433 = vld [vmem:[%s3 + $0x1d0] sm:$0xff]
    %v434 = vld [vmem:[%s3 + $0x1d8] sm:$0xff]
    %v435 = vld [vmem:[%s3 + $0x1e0] sm:$0xff]
    %v436 = vld [vmem:[%s3 + $0x1e8] sm:$0xff]
    %v437 = vld [vmem:[%s3 + $0x1f0] sm:$0xff]
    %v438 = vld [vmem:[%s3 + $0x1f8] sm:$0xff]
    %v439 = vld [vmem:[%s4] sm:$0xff]
    %v441 = vlaneseq
    %v442 = vshrl.u32 %v441, 7
    %v443 = vsub.s32 0, %v442
    %v444 = vrot.slane %v439, %v443
    %v445 = vlaneseq
    %v446 = vshrl.u32 %v445, 7
    %v447 = vsub.s32 1, %v446
    %v448 = vrot.slane %v439, %v447
    %v449 = vlaneseq
    %v450 = vshrl.u32 %v449, 7
    %v451 = vsub.s32 2, %v450
    %v452 = vrot.slane %v439, %v451
    %v453 = vlaneseq
    %v454 = vshrl.u32 %v453, 7
    %v455 = vsub.s32 3, %v454
    %v456 = vrot.slane %v439, %v455
    %v457 = vlaneseq
    %v458 = vshrl.u32 %v457, 7
    %v459 = vsub.s32 4, %v458
    %v460 = vrot.slane %v439, %v459
    %v461 = vlaneseq
    %v462 = vshrl.u32 %v461, 7
    %v463 = vsub.s32 5, %v462
    %v464 = vrot.slane %v439, %v463
    %v465 = vlaneseq
    %v466 = vshrl.u32 %v465, 7
    %v467 = vsub.s32 6, %v466
    %v468 = vrot.slane %v439, %v467
    %v469 = vlaneseq
    %v470 = vshrl.u32 %v469, 7
    %v471 = vsub.s32 7, %v470
    %v472 = vrot.slane %v439, %v471
    %v545 = vunpack.c.l.b16 %v375
    %v546 = vunpack.c.h.b16 %v375
    %v547 = vunpack.c.l.b16 %v376
    %v548 = vunpack.c.h.b16 %v376
    %v549 = vunpack.c.l.b16 %v377
    %v550 = vunpack.c.h.b16 %v377
    %v551 = vunpack.c.l.b16 %v378
    %v552 = vunpack.c.h.b16 %v378
    %v553 = vunpack.c.l.b16 %v379
    %v554 = vunpack.c.h.b16 %v379
    %v555 = vunpack.c.l.b16 %v380
    %v556 = vunpack.c.h.b16 %v380
    %v557 = vunpack.c.l.b16 %v381
    %v558 = vunpack.c.h.b16 %v381
    %v559 = vunpack.c.l.b16 %v382
    %v560 = vunpack.c.h.b16 %v382
    %v561 = vunpack.c.l.b16 %v383
    %v562 = vunpack.c.h.b16 %v383
    %v563 = vunpack.c.l.b16 %v384
    %v564 = vunpack.c.h.b16 %v384
    %v565 = vunpack.c.l.b16 %v385
    %v566 = vunpack.c.h.b16 %v385
    %v567 = vunpack.c.l.b16 %v386
    %v568 = vunpack.c.h.b16 %v386
    %v569 = vunpack.c.l.b16 %v387
    %v570 = vunpack.c.h.b16 %v387
    %v571 = vunpack.c.l.b16 %v388
    %v572 = vunpack.c.h.b16 %v388
    %v573 = vunpack.c.l.b16 %v389
    %v574 = vunpack.c.h.b16 %v389
    %v575 = vunpack.c.l.b16 %v390
    %v576 = vunpack.c.h.b16 %v390
    %v577 = vunpack.c.l.b16 %v391
    %v578 = vunpack.c.h.b16 %v391
    %v579 = vunpack.c.l.b16 %v392
    %v580 = vunpack.c.h.b16 %v392
    %v581 = vunpack.c.l.b16 %v393
    %v582 = vunpack.c.h.b16 %v393
    %v583 = vunpack.c.l.b16 %v394
    %v584 = vunpack.c.h.b16 %v394
    %v585 = vunpack.c.l.b16 %v395
    %v586 = vunpack.c.h.b16 %v395
    %v587 = vunpack.c.l.b16 %v396
    %v588 = vunpack.c.h.b16 %v396
    %v589 = vunpack.c.l.b16 %v397
    %v590 = vunpack.c.h.b16 %v397
    %v591 = vunpack.c.l.b16 %v398
    %v592 = vunpack.c.h.b16 %v398
    %v593 = vunpack.c.l.b16 %v399
    %v594 = vunpack.c.h.b16 %v399
    %v595 = vunpack.c.l.b16 %v400
    %v596 = vunpack.c.h.b16 %v400
    %v597 = vunpack.c.l.b16 %v401
    %v598 = vunpack.c.h.b16 %v401
    %v599 = vunpack.c.l.b16 %v402
    %v600 = vunpack.c.h.b16 %v402
    %v601 = vunpack.c.l.b16 %v403
    %v602 = vunpack.c.h.b16 %v403
    %v603 = vunpack.c.l.b16 %v404
    %v604 = vunpack.c.h.b16 %v404
    %v605 = vunpack.c.l.b16 %v405
    %v606 = vunpack.c.h.b16 %v405
    %v607 = vunpack.c.l.b16 %v406
    %v608 = vunpack.c.h.b16 %v406
    %v609 = vunpack.c.l.b16 %v407
    %v610 = vunpack.c.h.b16 %v407
    %v611 = vunpack.c.l.b16 %v408
    %v612 = vunpack.c.h.b16 %v408
    %v613 = vunpack.c.l.b16 %v409
    %v614 = vunpack.c.h.b16 %v409
    %v615 = vunpack.c.l.b16 %v410
    %v616 = vunpack.c.h.b16 %v410
    %v617 = vunpack.c.l.b16 %v411
    %v618 = vunpack.c.h.b16 %v411
    %v619 = vunpack.c.l.b16 %v412
    %v620 = vunpack.c.h.b16 %v412
    %v621 = vunpack.c.l.b16 %v413
    %v622 = vunpack.c.h.b16 %v413
    %v623 = vunpack.c.l.b16 %v414
    %v624 = vunpack.c.h.b16 %v414
    %v625 = vunpack.c.l.b16 %v415
    %v626 = vunpack.c.h.b16 %v415
    %v627 = vunpack.c.l.b16 %v416
    %v628 = vunpack.c.h.b16 %v416
    %v629 = vunpack.c.l.b16 %v417
    %v630 = vunpack.c.h.b16 %v417
    %v631 = vunpack.c.l.b16 %v418
    %v632 = vunpack.c.h.b16 %v418
    %v633 = vunpack.c.l.b16 %v419
    %v634 = vunpack.c.h.b16 %v419
    %v635 = vunpack.c.l.b16 %v420
    %v636 = vunpack.c.h.b16 %v420
    %v637 = vunpack.c.l.b16 %v421
    %v638 = vunpack.c.h.b16 %v421
    %v639 = vunpack.c.l.b16 %v422
    %v640 = vunpack.c.h.b16 %v422
    %v641 = vunpack.c.l.b16 %v423
    %v642 = vunpack.c.h.b16 %v423
    %v643 = vunpack.c.l.b16 %v424
    %v644 = vunpack.c.h.b16 %v424
    %v645 = vunpack.c.l.b16 %v425
    %v646 = vunpack.c.h.b16 %v425
    %v647 = vunpack.c.l.b16 %v426
    %v648 = vunpack.c.h.b16 %v426
    %v649 = vunpack.c.l.b16 %v427
    %v650 = vunpack.c.h.b16 %v427
    %v651 = vunpack.c.l.b16 %v428
    %v652 = vunpack.c.h.b16 %v428
    %v653 = vunpack.c.l.b16 %v429
    %v654 = vunpack.c.h.b16 %v429
    %v655 = vunpack.c.l.b16 %v430
    %v656 = vunpack.c.h.b16 %v430
    %v657 = vunpack.c.l.b16 %v431
    %v658 = vunpack.c.h.b16 %v431
    %v659 = vunpack.c.l.b16 %v432
    %v660 = vunpack.c.h.b16 %v432
    %v661 = vunpack.c.l.b16 %v433
    %v662 = vunpack.c.h.b16 %v433
    %v663 = vunpack.c.l.b16 %v434
    %v664 = vunpack.c.h.b16 %v434
    %v665 = vunpack.c.l.b16 %v435
    %v666 = vunpack.c.h.b16 %v435
    %v667 = vunpack.c.l.b16 %v436
    %v668 = vunpack.c.h.b16 %v436
    %v669 = vunpack.c.l.b16 %v437
    %v670 = vunpack.c.h.b16 %v437
    %v671 = vunpack.c.l.b16 %v438
    %v672 = vunpack.c.h.b16 %v438
    %v673 = vpack.c.b16 %v553, %v545
    %v674 = vpack.c.b16 %v554, %v546
    %v675 = vpack.c.b16 %v555, %v547
    %v676 = vpack.c.b16 %v556, %v548
    %v677 = vpack.c.b16 %v557, %v549
    %v678 = vpack.c.b16 %v558, %v550
    %v679 = vpack.c.b16 %v559, %v551
    %v680 = vpack.c.b16 %v560, %v552
    %v681 = vpack.c.b16 %v569, %v561
    %v682 = vpack.c.b16 %v570, %v562
    %v683 = vpack.c.b16 %v571, %v563
    %v684 = vpack.c.b16 %v572, %v564
    %v685 = vpack.c.b16 %v573, %v565
    %v686 = vpack.c.b16 %v574, %v566
    %v687 = vpack.c.b16 %v575, %v567
    %v688 = vpack.c.b16 %v576, %v568
    %v689 = vpack.c.b16 %v585, %v577
    %v690 = vpack.c.b16 %v586, %v578
    %v691 = vpack.c.b16 %v587, %v579
    %v692 = vpack.c.b16 %v588, %v580
    %v693 = vpack.c.b16 %v589, %v581
    %v694 = vpack.c.b16 %v590, %v582
    %v695 = vpack.c.b16 %v591, %v583
    %v696 = vpack.c.b16 %v592, %v584
    %v697 = vpack.c.b16 %v601, %v593
    %v698 = vpack.c.b16 %v602, %v594
    %v699 = vpack.c.b16 %v603, %v595
    %v700 = vpack.c.b16 %v604, %v596
    %v701 = vpack.c.b16 %v605, %v597
    %v702 = vpack.c.b16 %v606, %v598
    %v703 = vpack.c.b16 %v607, %v599
    %v704 = vpack.c.b16 %v608, %v600
    %v705 = vpack.c.b16 %v617, %v609
    %v706 = vpack.c.b16 %v618, %v610
    %v707 = vpack.c.b16 %v619, %v611
    %v708 = vpack.c.b16 %v620, %v612
    %v709 = vpack.c.b16 %v621, %v613
    %v710 = vpack.c.b16 %v622, %v614
    %v711 = vpack.c.b16 %v623, %v615
    %v712 = vpack.c.b16 %v624, %v616
    %v713 = vpack.c.b16 %v633, %v625
    %v714 = vpack.c.b16 %v634, %v626
    %v715 = vpack.c.b16 %v635, %v627
    %v716 = vpack.c.b16 %v636, %v628
    %v717 = vpack.c.b16 %v637, %v629
    %v718 = vpack.c.b16 %v638, %v630
    %v719 = vpack.c.b16 %v639, %v631
    %v720 = vpack.c.b16 %v640, %v632
    %v721 = vpack.c.b16 %v649, %v641
    %v722 = vpack.c.b16 %v650, %v642
    %v723 = vpack.c.b16 %v651, %v643
    %v724 = vpack.c.b16 %v652, %v644
    %v725 = vpack.c.b16 %v653, %v645
    %v726 = vpack.c.b16 %v654, %v646
    %v727 = vpack.c.b16 %v655, %v647
    %v728 = vpack.c.b16 %v656, %v648
    %v729 = vpack.c.b16 %v665, %v657
    %v730 = vpack.c.b16 %v666, %v658
    %v731 = vpack.c.b16 %v667, %v659
    %v732 = vpack.c.b16 %v668, %v660
    %v733 = vpack.c.b16 %v669, %v661
    %v734 = vpack.c.b16 %v670, %v662
    %v735 = vpack.c.b16 %v671, %v663
    %v736 = vpack.c.b16 %v672, %v664
    %801 = vmatprep.subr.bf16.mxu0 %v674
    %802 = vmatpush1.bf16.msra.mxu0 %v673
    %803 = vmatprep.subr.bf16.mxu0 %v682
    %804 = vmatpush1.bf16.msra.mxu0 %v681
    %805 = vmatprep.subr.bf16.mxu0 %v690
    %806 = vmatpush1.bf16.msra.mxu0 %v689
    %807 = vmatprep.subr.bf16.mxu0 %v698
    %808 = vmatpush1.bf16.msra.mxu0 %v697
    %809 = vmatprep.subr.bf16.mxu0 %v706
    %810 = vmatpush1.bf16.msra.mxu0 %v705
    %811 = vmatprep.subr.bf16.mxu0 %v714
    %812 = vmatpush1.bf16.msra.mxu0 %v713
    %813 = vmatprep.subr.bf16.mxu0 %v722
    %814 = vmatpush1.bf16.msra.mxu0 %v721
    %815 = vmatprep.subr.bf16.mxu0 %v730
    %816 = vmatpush1.bf16.msra.mxu0 %v729
    %817 = vmatprep.subr.bf16.mxu0 0
    %818 = vmatpush1.bf16.msra.mxu0 0
    %819 = vmatprep.subr.bf16.mxu0 0
    %820 = vmatpush1.bf16.msra.mxu0 0
    %821 = vmatprep.subr.bf16.mxu0 0
    %822 = vmatpush1.bf16.msra.mxu0 0
    %823 = vmatprep.subr.bf16.mxu0 0
    %824 = vmatpush1.bf16.msra.mxu0 0
    %825 = vmatprep.subr.bf16.mxu0 0
    %826 = vmatpush1.bf16.msra.mxu0 0
    %827 = vmatprep.subr.bf16.mxu0 0
    %828 = vmatpush1.bf16.msra.mxu0 0
    %829 = vmatprep.subr.bf16.mxu0 0
    %830 = vmatpush1.bf16.msra.mxu0 0
    %831 = vmatprep.subr.bf16.mxu0 0
    %832 = vmatpush1.bf16.msra.mxu0 0
    %833 = vmatprep.mubr.bf16.mxu0 0
    %834 = vmatmul.mubr.bf16.gmra.mrb[0].mxu0 %v374
    %v835 = vpop.f32.mrb[0].mxu0
    %v836 = vadd.f32 %v444, %v835
    %v837 = vpop.f32.mrb[0].mxu0
    %v838 = vadd.f32 %v448, %v837
    %v839 = vpop.f32.mrb[0].mxu0
    %v840 = vpop.f32.mrb[0].mxu0
    %841 = vdwg.mxu0
    %842 = vmatprep.subr.bf16.mxu0 %v676
    %843 = vmatpush1.bf16.msra.mxu0 %v675
    %844 = vmatprep.subr.bf16.mxu0 %v684
    %845 = vmatpush1.bf16.msra.mxu0 %v683
    %846 = vmatprep.subr.bf16.mxu0 %v692
    %847 = vmatpush1.bf16.msra.mxu0 %v691
    %848 = vmatprep.subr.bf16.mxu0 %v700
    %849 = vmatpush1.bf16.msra.mxu0 %v699
    %850 = vmatprep.subr.bf16.mxu0 %v708
    %851 = vmatpush1.bf16.msra.mxu0 %v707
    %852 = vmatprep.subr.bf16.mxu0 %v716
    %853 = vmatpush1.bf16.msra.mxu0 %v715
    %854 = vmatprep.subr.bf16.mxu0 %v724
    %855 = vmatpush1.bf16.msra.mxu0 %v723
    %856 = vmatprep.subr.bf16.mxu0 %v732
    %857 = vmatpush1.bf16.msra.mxu0 %v731
    %858 = vmatprep.subr.bf16.mxu0 0
    %859 = vmatpush1.bf16.msra.mxu0 0
    %860 = vmatprep.subr.bf16.mxu0 0
    %861 = vmatpush1.bf16.msra.mxu0 0
    %862 = vmatprep.subr.bf16.mxu0 0
    %863 = vmatpush1.bf16.msra.mxu0 0
    %864 = vmatprep.subr.bf16.mxu0 0
    %865 = vmatpush1.bf16.msra.mxu0 0
    %866 = vmatprep.subr.bf16.mxu0 0
    %867 = vmatpush1.bf16.msra.mxu0 0
    %868 = vmatprep.subr.bf16.mxu0 0
    %869 = vmatpush1.bf16.msra.mxu0 0
    %870 = vmatprep.subr.bf16.mxu0 0
    %871 = vmatpush1.bf16.msra.mxu0 0
    %872 = vmatprep.subr.bf16.mxu0 0
    %873 = vmatpush1.bf16.msra.mxu0 0
    %874 = vmatprep.mubr.bf16.mxu0 0
    %875 = vmatmul.mubr.bf16.gmra.mrb[0].mxu0 %v374
    %v876 = vpop.f32.mrb[0].mxu0
    %v877 = vadd.f32 %v452, %v876
    %v878 = vpop.f32.mrb[0].mxu0
    %v879 = vadd.f32 %v456, %v878
    %v880 = vpop.f32.mrb[0].mxu0
    %v881 = vpop.f32.mrb[0].mxu0
    %882 = vdwg.mxu0
    %883 = vmatprep.subr.bf16.mxu0 %v678
    %884 = vmatpush1.bf16.msra.mxu0 %v677
    %885 = vmatprep.subr.bf16.mxu0 %v686
    %886 = vmatpush1.bf16.msra.mxu0 %v685
    %887 = vmatprep.subr.bf16.mxu0 %v694
    %888 = vmatpush1.bf16.msra.mxu0 %v693
    %889 = vmatprep.subr.bf16.mxu0 %v702
    %890 = vmatpush1.bf16.msra.mxu0 %v701
    %891 = vmatprep.subr.bf16.mxu0 %v710
    %892 = vmatpush1.bf16.msra.mxu0 %v709
    %893 = vmatprep.subr.bf16.mxu0 %v718
    %894 = vmatpush1.bf16.msra.mxu0 %v717
    %895 = vmatprep.subr.bf16.mxu0 %v726
    %896 = vmatpush1.bf16.msra.mxu0 %v725
    %897 = vmatprep.subr.bf16.mxu0 %v734
    %898 = vmatpush1.bf16.msra.mxu0 %v733
    %899 = vmatprep.subr.bf16.mxu0 0
    %900 = vmatpush1.bf16.msra.mxu0 0
    %901 = vmatprep.subr.bf16.mxu0 0
    %902 = vmatpush1.bf16.msra.mxu0 0
    %903 = vmatprep.subr.bf16.mxu0 0
    %904 = vmatpush1.bf16.msra.mxu0 0
    %905 = vmatprep.subr.bf16.mxu0 0
    %906 = vmatpush1.bf16.msra.mxu0 0
    %907 = vmatprep.subr.bf16.mxu0 0
    %908 = vmatpush1.bf16.msra.mxu0 0
    %909 = vmatprep.subr.bf16.mxu0 0
    %910 = vmatpush1.bf16.msra.mxu0 0
    %911 = vmatprep.subr.bf16.mxu0 0
    %912 = vmatpush1.bf16.msra.mxu0 0
    %913 = vmatprep.subr.bf16.mxu0 0
    %914 = vmatpush1.bf16.msra.mxu0 0
    %915 = vmatprep.mubr.bf16.mxu0 0
    %916 = vmatmul.mubr.bf16.gmra.mrb[0].mxu0 %v374
    %v917 = vpop.f32.mrb[0].mxu0
    %v918 = vadd.f32 %v460, %v917
    %v919 = vpop.f32.mrb[0].mxu0
    %v920 = vadd.f32 %v464, %v919
    %v921 = vpop.f32.mrb[0].mxu0
    %v922 = vpop.f32.mrb[0].mxu0
    %923 = vdwg.mxu0
    %924 = vmatprep.subr.bf16.mxu0 %v680
    %925 = vmatpush1.bf16.msra.mxu0 %v679
    %926 = vmatprep.subr.bf16.mxu0 %v688
    %927 = vmatpush1.bf16.msra.mxu0 %v687
    %928 = vmatprep.subr.bf16.mxu0 %v696
    %929 = vmatpush1.bf16.msra.mxu0 %v695
    %930 = vmatprep.subr.bf16.mxu0 %v704
    %931 = vmatpush1.bf16.msra.mxu0 %v703
    %932 = vmatprep.subr.bf16.mxu0 %v712
    %933 = vmatpush1.bf16.msra.mxu0 %v711
    %934 = vmatprep.subr.bf16.mxu0 %v720
    %935 = vmatpush1.bf16.msra.mxu0 %v719
    %936 = vmatprep.subr.bf16.mxu0 %v728
    %937 = vmatpush1.bf16.msra.mxu0 %v727
    %938 = vmatprep.subr.bf16.mxu0 %v736
    %939 = vmatpush1.bf16.msra.mxu0 %v735
    %940 = vmatprep.subr.bf16.mxu0 0
    %941 = vmatpush1.bf16.msra.mxu0 0
    %942 = vmatprep.subr.bf16.mxu0 0
    %943 = vmatpush1.bf16.msra.mxu0 0
    %944 = vmatprep.subr.bf16.mxu0 0
    %945 = vmatpush1.bf16.msra.mxu0 0
    %946 = vmatprep.subr.bf16.mxu0 0
    %947 = vmatpush1.bf16.msra.mxu0 0
    %948 = vmatprep.subr.bf16.mxu0 0
    %949 = vmatpush1.bf16.msra.mxu0 0
    %950 = vmatprep.subr.bf16.mxu0 0
    %951 = vmatpush1.bf16.msra.mxu0 0
    %952 = vmatprep.subr.bf16.mxu0 0
    %953 = vmatpush1.bf16.msra.mxu0 0
    %954 = vmatprep.subr.bf16.mxu0 0
    %955 = vmatpush1.bf16.msra.mxu0 0
    %956 = vmatprep.mubr.bf16.mxu0 0
    %957 = vmatmul.mubr.bf16.gmra.mrb[0].mxu0 %v374
    %v958 = vpop.f32.mrb[0].mxu0
    %v959 = vadd.f32 %v468, %v958
    %v960 = vpop.f32.mrb[0].mxu0
    %v961 = vadd.f32 %v472, %v960
    %v962 = vpop.f32.mrb[0].mxu0
    %v963 = vpop.f32.mrb[0].mxu0
    %964 = vdwg.mxu0
    %965 = vst [vmem:[#allocation2] sm:$0xff] %v836
    %966 = vst [vmem:[#allocation2 + $0x8] sm:$0xff] %v838
    %967 = vst [vmem:[#allocation2 + $0x10] sm:$0xff] %v877
    %968 = vst [vmem:[#allocation2 + $0x18] sm:$0xff] %v879
    %969 = vst [vmem:[#allocation2 + $0x20] sm:$0xff] %v918
    %970 = vst [vmem:[#allocation2 + $0x28] sm:$0xff] %v920
    %971 = vst [vmem:[#allocation2 + $0x30] sm:$0xff] %v959
    %vm972 = vcmask 850944
    %973 = vst.msk [vmem:[#allocation2 + $0x38] sm:$0xff] %vm972, %v961
    // Predicated region
    $region22: #{tpu_custom_call.1} parent=1 // pred_check
      _
    $region23: #{tpu_custom_call.1} parent=1 // pred_check_branch
      %975 = sbr.rel (0) target = $region25
    $region24: #{tpu_custom_call.1} parent=1 // pred_region
      %s977 = ssub.s32 1024, 1024
      %978 = vsyncadd [#allocation3], %s977
      %s980 = sshll.u32 [#allocation2], 4
      %s981 = int_to_ptr.vmem [resolvable:$true] %s980
      %983 = dma.vmem_to_hbm [thread:$0]  %s981, 1024, %s5, [#allocation3]
    $region25: #{tpu_custom_call.1} parent=1 // pred_fallthru
      _
    // Predicated region
    $region26: #{tpu_custom_call.1} parent=1 // pred_check
      _
    $region27: #{tpu_custom_call.1} parent=1 // pred_check_branch
      %985 = sbr.rel (0) target = $region29
    $region28: #{tpu_custom_call.1} parent=1 // pred_region
      %986 = dma.done [#allocation3], 1024
    $region29: #{tpu_custom_call.1} parent=1 // pred_fallthru
      _
    %987 = vsyncpa [#allocation3], 1

</llo_original>
